<compile_context>
chip_gen: v7x
topology: tpu7x:2x2x1
jax: 0.10.0
libtpu: 0.0.40
codegen_flags: <defaults>
</compile_context>

<pallas_src>
import math

import jax
import jax.numpy as jnp
import numpy as np
from jax.experimental import pallas as pl
from jax.experimental.pallas import tpu as pltpu


def _round_up(n, m):
    return ((n + m - 1) // m) * m


def _cdiv(a, b):
    return (a + b - 1) // b


def _make_gmm_kernel(D, TD, slice_kside, mask_d):
    """Builds the streamed GMM log-prob kernel.

    Block shapes seen by the kernel:
      x_ref     : (TB, TD)          caller dtype (cast to f32 in-kernel)
      niv_ref   : (Kp, Dk) or (Kp, TD)   f32   -0.5 / var
      miv_ref   : (Kp, Dk) or (Kp, TD)   f32   mu / var
      const_ref : (Kp, 1)           f32   folded constant (+log_w, -1e30 pad)
      out_ref   : (1, TB)           f32   lane-dense output block
      acc_ref   : (Kp, TB)          f32   scratch, persists across D tiles
    """

    def kernel(x_ref, niv_ref, miv_ref, const_ref, out_ref, acc_ref):
        j = pl.program_id(1)

        @pl.when(j == 0)
        def _init():
            # Per-component constant folded into the accumulator init.
            # Padded components start at -1e30 -> vanish in the logsumexp.
            acc_ref[...] = jnp.broadcast_to(const_ref[...], acc_ref.shape)

        x = x_ref[...].astype(jnp.float32)                     # (TB, TD)
        if mask_d:
            # Last D tile overhangs the (unpadded) x array: zero the garbage
            # tail so 0 * finite == 0 in the matmuls (NaN/Inf safe).  For all
            # earlier tiles D - j*TD >= TD, so the mask is a no-op.
            col = jax.lax.broadcasted_iota(jnp.int32, (1, TD), 1)
            x = jnp.where(col < D - j * TD, x, 0.0)

        if slice_kside:
            d0 = pl.multiple_of(j * TD, 128)
            niv = niv_ref[:, pl.ds(d0, TD)]                    # (Kp, TD)
            miv = miv_ref[:, pl.ds(d0, TD)]
        else:
            niv = niv_ref[...]
            miv = miv_ref[...]

        # (Kp, TB): components on sublanes, batch on lanes (lane-dense out).
        # NT-style contraction on the minor dims (same pattern as q @ k^T in
        # flash attention) -- no transpose of the big x tile.
        dn = (((1,), (1,)), ((), ()))
        t1 = jax.lax.dot_general(niv, x * x, dn,
                                 preferred_element_type=jnp.float32)
        t2 = jax.lax.dot_general(miv, x, dn,
                                 preferred_element_type=jnp.float32)
        acc_ref[...] += t1 + t2

        @pl.when(j == pl.num_programs(1) - 1)
        def _finalize():
            z = acc_ref[...]                                   # (Kp, TB)
            m = jnp.max(z, axis=0, keepdims=True)              # (1, TB)
            s = jnp.sum(jnp.exp(z - m), axis=0, keepdims=True)
            out_ref[...] = (m + jnp.log(s)).astype(out_ref.dtype)

    return kernel


def gaussian_mixture_log_prob(x, mu, logvar, logits_w,
                              min_std=0.01, max_std=1.5,
                              block_b=1024, block_d=2048,
                              kside_resident=None):
    """Pallas implementation of GaussianMixture.forward (log-prob of x)."""
    B = x.shape[0]
    K = mu.shape[0]
    D = int(np.prod(mu.shape[1:])) if mu.ndim > 1 else 1

    x2 = x.reshape(B, D)                     # caller dtype; never padded/copied
    mu2 = mu.reshape(K, D).astype(jnp.float32)
    lv2 = logvar.reshape(K, D).astype(jnp.float32)
    lw = logits_w.reshape(K).astype(jnp.float32)

    # --- x-independent O(K*D) preprocessing, hoisted out of the hot path.
    #     clamp commutes with the monotone exp/log -> no exp/log/div on std.
    log_std = jnp.clip(0.5 * lv2, math.log(min_std), math.log(max_std))
    inv_var = jnp.exp(-2.0 * log_std)                     # 1 / std^2   (K, D)
    neg_half_iv = -0.5 * inv_var                          # folded -0.5
    mu_iv = mu2 * inv_var                                 # mu / std^2  (K, D)
    log_w = jax.nn.log_softmax(lw)
    const = (-0.5 * jnp.sum(mu2 * mu_iv, axis=-1)
             - jnp.sum(log_std, axis=-1)
             - 0.5 * D * math.log(2.0 * math.pi)
             + log_w)                                     # (K,)

    # --- tile selection: minimal overhang, x is never padded in HBM.
    block_b = max(int(block_b), 8)
    block_d = _round_up(max(int(block_d), 128), 128)

    # B axis: >=2 tiles whenever B > 128 (keeps both v7x TCs busy); TB is a
    # multiple of 128 when tiled (legal & lane-dense out blocks), otherwise a
    # single multiple-of-8 tile covering all of B.
    nb = max(_cdiv(B, block_b), 2 if B > 128 else 1)
    TB = _round_up(_cdiv(B, nb), 128)
    nb = _cdiv(B, TB)
    if nb == 1:
        TB = _round_up(B, 8)

    # D axis (reduction, innermost grid dim): TD multiple of 128, or TD == D.
    Dp128 = _round_up(D, 128)
    nd = _cdiv(Dp128, block_d)
    TD = _round_up(_cdiv(Dp128, nd), 128)
    nd = _cdiv(D, TD)
    if nd == 1:
        TD = D
    mask_d = (nd * TD != D)

    Kp = max(8, _round_up(K, 8))
    Dk = nd * TD     # the tiny K-side arrays are zero-padded so in-kernel
                     # slices / streamed blocks never go out of bounds.

    niv_p = jnp.pad(neg_half_iv, ((0, Kp - K), (0, Dk - D)))
    miv_p = jnp.pad(mu_iv, ((0, Kp - K), (0, Dk - D)))
    const_p = jnp.full((Kp, 1), -1e30, jnp.float32).at[:K, 0].set(const)

    if kside_resident is None:
        kside_resident = (2 * 2 * Kp * Dk * 4) <= (8 << 20)
    slice_kside = bool(kside_resident) and nd > 1

    if kside_resident:
        # Fully VMEM-resident: constant block index -> DMA'd once.
        k_spec = pl.BlockSpec((Kp, Dk), lambda i, j: (0, 0))
    else:
        # Fallback for very large K*D: stream one (Kp, TD) block per D tile.
        k_spec = pl.BlockSpec((Kp, TD), lambda i, j: (0, j))

    x_itemsize = jnp.dtype(x2.dtype).itemsize
    vmem_needed = (2 * TB * TD * x_itemsize
                   + 2 * 2 * Kp * (Dk if kside_resident else TD) * 4
                   + Kp * max(TB, 128) * 4
                   + 2 * 8 * max(TB, 128) * 4
                   + 2 * Kp * 128 * 4)
    vmem_limit = int(min(48 << 20, max(32 << 20, vmem_needed + (6 << 20))))

    kernel = _make_gmm_kernel(D, TD, slice_kside, mask_d)

    out = pl.pallas_call(
        kernel,
        out_shape=jax.ShapeDtypeStruct((1, nb * TB), jnp.float32),
        grid=(nb, nd),
        in_specs=[
            pl.BlockSpec((TB, TD), lambda i, j: (i, j)),      # x stream
            k_spec,                                           # -0.5 / var
            k_spec,                                           # mu / var
            pl.BlockSpec((Kp, 1), lambda i, j: (0, 0)),       # per-K constant
        ],
        out_specs=pl.BlockSpec((1, TB), lambda i, j: (0, i)),  # lane-dense
        scratch_shapes=[pltpu.VMEM((Kp, TB), jnp.float32)],
        compiler_params=pltpu.CompilerParams(
            dimension_semantics=("parallel", "arbitrary"),
            vmem_limit_bytes=vmem_limit),
    )(x2, niv_p, miv_p, const_p)
    return out[0, :B]


def _reference_log_prob(x, mu, logvar, logits_w, min_std=0.01, max_std=1.5):
    """Pure-JAX reference mirroring the PyTorch module (centered form)."""
    B = x.shape[0]
    K = mu.shape[0]
    D = int(np.prod(mu.shape[1:])) if mu.ndim > 1 else 1
    xf = x.reshape(B, 1, D).astype(jnp.float32)
    muf = mu.reshape(1, K, D).astype(jnp.float32)
    std = jnp.clip(jnp.exp(0.5 * logvar.reshape(1, K, D).astype(jnp.float32)),
                   min_std, max_std)
    lp_el = (-0.5 * ((xf - muf) / std) ** 2
             - jnp.log(std) - 0.5 * math.log(2.0 * math.pi))
    lp = jnp.sum(lp_el, axis=-1)                                   # (B, K)
    log_w = jax.nn.log_softmax(logits_w.reshape(K).astype(jnp.float32),
                               axis=0)[None, :]                    # (1, K)
    return jax.scipy.special.logsumexp(lp + log_w, axis=1)         # (B,)


if __name__ == "__main__":
    key = jax.random.PRNGKey(0)
    k1, k2, k3, k4 = jax.random.split(key, 4)

    # Test 1: module-sized NCHW input, tiny batch (single small B tile,
    # TB = 8 > B overhang), K padded to 8, single full-D tile.
    B, C, H, W, K = 2, 4, 16, 16, 5
    x = jax.random.normal(k1, (B, C, H, W), dtype=jnp.float32)
    mu = jax.random.normal(k2, (K, C, H, W), dtype=jnp.float32)
    logvar = 0.1 * jax.random.normal(k3, (K, C, H, W), dtype=jnp.float32)
    logits_w = jax.random.normal(k4, (K,), dtype=jnp.float32)
    out = jax.block_until_ready(
        gaussian_mixture_log_prob(x, mu, logvar, logits_w))
    ref = _reference_log_prob(x, mu, logvar, logits_w)
    np.testing.assert_allclose(np.asarray(out), np.asarray(ref),
                               rtol=1e-4, atol=1e-3)

    # Test 2: two B tiles (parallel axis, ragged last tile handled by block
    # overhang -- no wrapper pad of x), K > 8, D not a multiple of 128.
    B2, C2, H2, W2, K2 = 300, 3, 8, 8, 9
    x2 = jax.random.normal(k1, (B2, C2, H2, W2), dtype=jnp.float32)
    mu2 = jax.random.normal(k2, (K2, C2, H2, W2), dtype=jnp.float32)
    lv2 = 0.1 * jax.random.normal(k3, (K2, C2, H2, W2), dtype=jnp.float32)
    lw2 = jax.random.normal(k4, (K2,), dtype=jnp.float32)
    out2 = jax.block_until_ready(
        gaussian_mixture_log_prob(x2, mu2, lv2, lw2))
    ref2 = _reference_log_prob(x2, mu2, lv2, lw2)
    np.testing.assert_allclose(np.asarray(out2), np.asarray(ref2),
                               rtol=1e-4, atol=1e-3)

    # Test 3: multi-D-tile streaming with a ragged last D tile (in-kernel
    # iota mask), both K-side modes (VMEM-resident sliced & streamed).
    B3, C3, H3, W3, K3 = 64, 3, 17, 17, 6
    x3 = jax.random.normal(k1, (B3, C3, H3, W3), dtype=jnp.float32)
    mu3 = jax.random.normal(k2, (K3, C3, H3, W3), dtype=jnp.float32)
    lv3 = 0.1 * jax.random.normal(k3, (K3, C3, H3, W3), dtype=jnp.float32)
    lw3 = jax.random.normal(k4, (K3,), dtype=jnp.float32)
    ref3 = _reference_log_prob(x3, mu3, lv3, lw3)
    out3a = jax.block_until_ready(
        gaussian_mixture_log_prob(x3, mu3, lv3, lw3, block_d=512))
    np.testing.assert_allclose(np.asarray(out3a), np.asarray(ref3),
                               rtol=5e-4, atol=5e-3)
    out3b = jax.block_until_ready(
        gaussian_mixture_log_prob(x3, mu3, lv3, lw3, block_d=512,
                                  kside_resident=False))
    np.testing.assert_allclose(np.asarray(out3b), np.asarray(ref3),
                               rtol=5e-4, atol=5e-3)

    print("KERNEL_OK")
</pallas_src>

<mosaic_0001>
module attributes {stable_mosaic.version = 11 : i64} {
  func.func @kernel(%arg0: i32, %arg1: i32, %arg2: memref<8x1024xf32, #tpu.memory_space<vmem>>, %arg3: memref<8x1024xf32, #tpu.memory_space<vmem>>, %arg4: memref<8x1024xf32, #tpu.memory_space<vmem>>, %arg5: memref<8x1xf32, #tpu.memory_space<vmem>>, %arg6: memref<1x8xf32, #tpu.memory_space<vmem>>, %arg7: memref<8x8xf32, #tpu.memory_space<vmem>>) attributes {dimension_semantics = [#tpu.dimension_semantics<parallel>, #tpu.dimension_semantics<arbitrary>], iteration_bounds = array<i64: 1, 1>, scalar_prefetch = 0 : i64, scratch_operands = 1 : i64, tpu.core_type = #tpu.core_type<tc>, window_params = [{transform_indices = @transform_0, window_bounds = array<i64: 8, 1024>}, {pipeline_mode = #tpu.pipeline_mode<synchronous>, transform_indices = @transform_1, window_bounds = array<i64: 8, 1024>}, {pipeline_mode = #tpu.pipeline_mode<synchronous>, transform_indices = @transform_2, window_bounds = array<i64: 8, 1024>}, {pipeline_mode = #tpu.pipeline_mode<synchronous>, transform_indices = @transform_3, window_bounds = array<i64: 8, 1>}, {transform_indices = @transform_4, window_bounds = array<i64: 1, 8>}]} {
    %c0_i32 = arith.constant 0 : i32
    %0 = arith.cmpi eq, %arg1, %c0_i32 : i32
    %1 = arith.extui %0 : i1 to i32
    %c0_i32_0 = arith.constant 0 : i32
    %2 = arith.cmpi ne, %1, %c0_i32_0 : i32
    scf.if %2 {
      %c0_13 = arith.constant 0 : index
      %c0_14 = arith.constant 0 : index
      %16 = vector.load %arg5[%c0_13, %c0_14] : memref<8x1xf32, #tpu.memory_space<vmem>>, vector<8x1xf32>
      %17 = vector.shape_cast %16 : vector<8x1xf32> to vector<8x1xf32>
      %18 = vector.broadcast %17 : vector<8x1xf32> to vector<8x8xf32>
      %c0_15 = arith.constant 0 : index
      %c0_16 = arith.constant 0 : index
      %19 = vector.load %arg7[%c0_15, %c0_16] : memref<8x8xf32, #tpu.memory_space<vmem>>, vector<8x8xf32>
      tpu.vector_store %arg7[%c0_15, %c0_16], %18 {strides = array<i32>} : memref<8x8xf32, #tpu.memory_space<vmem>>, vector<8x8xf32>,
    } else {
    }
    %c0 = arith.constant 0 : index
    %c0_1 = arith.constant 0 : index
    %3 = vector.load %arg2[%c0, %c0_1] : memref<8x1024xf32, #tpu.memory_space<vmem>>, vector<8x1024xf32>
    %c0_2 = arith.constant 0 : index
    %c0_3 = arith.constant 0 : index
    %4 = vector.load %arg3[%c0_2, %c0_3] : memref<8x1024xf32, #tpu.memory_space<vmem>>, vector<8x1024xf32>
    %c0_4 = arith.constant 0 : index
    %c0_5 = arith.constant 0 : index
    %5 = vector.load %arg4[%c0_4, %c0_5] : memref<8x1024xf32, #tpu.memory_space<vmem>>, vector<8x1024xf32>
    %6 = arith.mulf %3, %3 : vector<8x1024xf32>
    %cst = arith.constant dense<0.000000e+00> : vector<8x8xf32>
    %7 = tpu.matmul %4, %6, %cst {dimension_numbers = #tpu.dot_dimension_numbers<[1], [1], [0], [0], [0, 0, 1, 0], [], []>} : vector<8x1024xf32>, vector<8x1024xf32>, vector<8x8xf32> -> vector<8x8xf32>
    %cst_6 = arith.constant dense<0.000000e+00> : vector<8x8xf32>
    %8 = tpu.matmul %5, %3, %cst_6 {dimension_numbers = #tpu.dot_dimension_numbers<[1], [1], [0], [0], [0, 0, 1, 0], [], []>} : vector<8x1024xf32>, vector<8x1024xf32>, vector<8x8xf32> -> vector<8x8xf32>
    %c0_7 = arith.constant 0 : index
    %c0_8 = arith.constant 0 : index
    %9 = vector.load %arg7[%c0_7, %c0_8] : memref<8x8xf32, #tpu.memory_space<vmem>>, vector<8x8xf32>
    %10 = arith.addf %7, %8 : vector<8x8xf32>
    %11 = arith.addf %9, %10 : vector<8x8xf32>
    %c0_9 = arith.constant 0 : index
    %c0_10 = arith.constant 0 : index
    %12 = vector.load %arg7[%c0_9, %c0_10] : memref<8x8xf32, #tpu.memory_space<vmem>>, vector<8x8xf32>
    tpu.vector_store %arg7[%c0_9, %c0_10], %11 {strides = array<i32>} : memref<8x8xf32, #tpu.memory_space<vmem>>, vector<8x8xf32>,
    %c0_i32_11 = arith.constant 0 : i32
    %13 = arith.cmpi eq, %arg1, %c0_i32_11 : i32
    %14 = arith.extui %13 : i1 to i32
    %c0_i32_12 = arith.constant 0 : i32
    %15 = arith.cmpi ne, %14, %c0_i32_12 : i32
    scf.if %15 {
      %c0_13 = arith.constant 0 : index
      %c0_14 = arith.constant 0 : index
      %16 = vector.load %arg7[%c0_13, %c0_14] : memref<8x8xf32, #tpu.memory_space<vmem>>, vector<8x8xf32>
      %cst_15 = arith.constant dense<0xFF800000> : vector<8xf32>
      %17 = vector.multi_reduction <maximumf>, %16, %cst_15 [0] : vector<8x8xf32> to vector<8xf32>
      %18 = vector.shape_cast %17 : vector<8xf32> to vector<1x8xf32>
      %19 = vector.broadcast %18 : vector<1x8xf32> to vector<8x8xf32>
      %20 = arith.subf %16, %19 : vector<8x8xf32>
      %21 = math.exp %20 : vector<8x8xf32>
      %cst_16 = arith.constant dense<0.000000e+00> : vector<8xf32>
      %22 = vector.multi_reduction <add>, %21, %cst_16 [0] : vector<8x8xf32> to vector<8xf32>
      %23 = vector.shape_cast %22 : vector<8xf32> to vector<1x8xf32>
      %24 = math.log %23 : vector<1x8xf32>
      %25 = arith.addf %18, %24 : vector<1x8xf32>
      %c0_17 = arith.constant 0 : index
      %c0_18 = arith.constant 0 : index
      %26 = vector.load %arg6[%c0_17, %c0_18] : memref<1x8xf32, #tpu.memory_space<vmem>>, vector<1x8xf32>
      tpu.vector_store %arg6[%c0_17, %c0_18], %25 {strides = array<i32>} : memref<1x8xf32, #tpu.memory_space<vmem>>, vector<1x8xf32>,
    } else {
    }
    return
  }
  func.func @transform_0(%arg0: i32, %arg1: i32) -> (i32, i32) {
    %c0_i32 = arith.constant 0 : i32
    return %arg0, %arg1 : i32, i32
  }
  func.func @transform_1(%arg0: i32, %arg1: i32) -> (i32, i32) {
    %c0_i32 = arith.constant 0 : i32
    %c0_i32_0 = arith.constant 0 : i32
    %c0_i32_1 = arith.constant 0 : i32
    return %c0_i32, %c0_i32_0 : i32, i32
  }
  func.func @transform_2(%arg0: i32, %arg1: i32) -> (i32, i32) {
    %c0_i32 = arith.constant 0 : i32
    %c0_i32_0 = arith.constant 0 : i32
    %c0_i32_1 = arith.constant 0 : i32
    return %c0_i32, %c0_i32_0 : i32, i32
  }
  func.func @transform_3(%arg0: i32, %arg1: i32) -> (i32, i32) {
    %c0_i32 = arith.constant 0 : i32
    %c0_i32_0 = arith.constant 0 : i32
    %c0_i32_1 = arith.constant 0 : i32
    return %c0_i32, %c0_i32_0 : i32, i32
  }
  func.func @transform_4(%arg0: i32, %arg1: i32) -> (i32, i32) {
    %c0_i32 = arith.constant 0 : i32
    %c0_i32_0 = arith.constant 0 : i32
    return %c0_i32, %arg0 : i32, i32
  }
}

</mosaic_0001>

<llo_original>
// kernel: tpu_custom_call.1
$region0: #{tpu_custom_call.1}
  #allocation0 [shape = 'u32[]', space=smem, size = 0x4, offset = 0x4, fixed_abs, tag = 'smem constant byte address 0x4 - core index']
  #allocation1 [shape = 'u32[144,128]{1,0:T(1,128)}', space=vmem, size = 0x12000, scoped, tag = 'internal scratch']
  #allocation2 [shape = 'f32[8,8]{1,0:T(8,128)}', space=vmem, size = 0x1000, scoped, tag = 'scratch operand']
  %s0 = inlined_call_operand.hbm [shape: f32[2,1024], index: 0, kind: input, shape index: {}]
  %s1 = inlined_call_operand.hbm [shape: f32[8,1024], index: 1, kind: input, shape index: {}]
  %s2 = inlined_call_operand.hbm [shape: f32[8,1024], index: 2, kind: input, shape index: {}]
  %s3 = inlined_call_operand.vmem [shape: f32[8,1], index: 3, kind: input, shape index: {}]
  %s4 = inlined_call_operand.hbm [shape: f32[1,8], index: 4, kind: output, shape index: {}]
  %s5 = sld [smem:[#allocation0]]
  $region46: #{tpu_custom_call.1} parent=0
    _
  %s7 = ssub.s32 1, %s5
  %s8 = scalar_select 0, %s7, %s5
  $region1: #{tpu_custom_call.1} parent=0
    #allocation3 [shape = 'u8[32768]{0}', space=vmem, size = 0x8000, scoped, tag = 'input window, operand 0, single buffered']
    #allocation4 [shape = 's32[1]{0}', space=sflag, size = 0x4, scoped, tag = 'scoped memory for tpu_custom_call.1']
    #allocation5 [shape = 's32[1]{0}', space=sflag, size = 0x4, scoped, tag = 'scoped memory for tpu_custom_call.1']
    #allocation6 [shape = 'u8[32768]{0}', space=vmem, size = 0x8000, scoped, tag = 'input window, operand 1, single buffered']
    #allocation7 [shape = 's32[1]{0}', space=sflag, size = 0x4, scoped, tag = 'scoped memory for tpu_custom_call.1']
    #allocation8 [shape = 'u8[32768]{0}', space=vmem, size = 0x8000, scoped, tag = 'input window, operand 2, single buffered']
    #allocation9 [shape = 'u8[512]{0}', space=vmem, size = 0x400, scoped, tag = 'output window, operand 0, single buffered']
    %9 = vsyncpa [#allocation4], 0
    %10 = vsyncpa [#allocation7], 0
    %11 = vsyncpa [#allocation5], 0
    // Predicated region
    $region2: #{tpu_custom_call.1} parent=1 // pred_check
      _
    $region3: #{tpu_custom_call.1} parent=1 // pred_check_branch
      %13 = sbr.rel (0) target = $region5
    $region4: #{tpu_custom_call.1} parent=1 // pred_region
      %s15 = ssub.s32 1024, 256
      %16 = vsyncadd [#allocation4], %s15
      %s17 = sshll.u32 [#allocation3], 4
      %s18 = int_to_ptr.vmem [resolvable:$true] %s17
      %23 = dma.hbm_to_vmem [thread:$0]  %s0, 256, %s18, [#allocation4], 256, 256, 16
    $region5: #{tpu_custom_call.1} parent=1 // pred_fallthru
      _
    // Predicated region
    $region6: #{tpu_custom_call.1} parent=1 // pred_check
      _
    $region7: #{tpu_custom_call.1} parent=1 // pred_check_branch
      %25 = sbr.rel (0) target = $region9
    $region8: #{tpu_custom_call.1} parent=1 // pred_region
      %s27 = ssub.s32 1024, 1024
      %28 = vsyncadd [#allocation7], %s27
      %s30 = sshll.u32 [#allocation6], 4
      %s31 = int_to_ptr.vmem [resolvable:$true] %s30
      %33 = dma.hbm_to_vmem [thread:$0]  %s1, 1024, %s31, [#allocation7]
    $region9: #{tpu_custom_call.1} parent=1 // pred_fallthru
      _
    // Predicated region
    $region10: #{tpu_custom_call.1} parent=1 // pred_check
      _
    $region11: #{tpu_custom_call.1} parent=1 // pred_check_branch
      %35 = sbr.rel (0) target = $region13
    $region12: #{tpu_custom_call.1} parent=1 // pred_region
      %s37 = ssub.s32 1024, 1024
      %38 = vsyncadd [#allocation7], %s37
      %s40 = sshll.u32 [#allocation8], 4
      %s41 = int_to_ptr.vmem [resolvable:$true] %s40
      %43 = dma.hbm_to_vmem [thread:$0]  %s2, 1024, %s41, [#allocation7]
    $region13: #{tpu_custom_call.1} parent=1 // pred_fallthru
      _
    // Predicated region
    $region14: #{tpu_custom_call.1} parent=1 // pred_check
      _
    $region15: #{tpu_custom_call.1} parent=1 // pred_check_branch
      %45 = sbr.rel (0) target = $region17
    $region16: #{tpu_custom_call.1} parent=1 // pred_region
      _
    $region17: #{tpu_custom_call.1} parent=1 // pred_fallthru
      _
    // Predicated region
    $region18: #{tpu_custom_call.1} parent=1 // pred_check
      _
    $region19: #{tpu_custom_call.1} parent=1 // pred_check_branch
      %47 = sbr.rel (0) target = $region21
    $region20: #{tpu_custom_call.1} parent=1 // pred_region
      %48 = dma.done [#allocation4], 1024
    $region21: #{tpu_custom_call.1} parent=1 // pred_fallthru
      _
    // Predicated region
    $region22: #{tpu_custom_call.1} parent=1 // pred_check
      _
    $region23: #{tpu_custom_call.1} parent=1 // pred_check_branch
      %50 = sbr.rel (0) target = $region25
    $region24: #{tpu_custom_call.1} parent=1 // pred_region
      %51 = dma.done [#allocation7], 1024
    $region25: #{tpu_custom_call.1} parent=1 // pred_fallthru
      _
    // Predicated region
    $region26: #{tpu_custom_call.1} parent=1 // pred_check
      _
    $region27: #{tpu_custom_call.1} parent=1 // pred_check_branch
      %53 = sbr.rel (0) target = $region29
    $region28: #{tpu_custom_call.1} parent=1 // pred_region
      %54 = dma.done [#allocation7], 1024
    $region29: #{tpu_custom_call.1} parent=1 // pred_fallthru
      _
    %p55 = scmp.eq.s32.totalorder 0, 0
    // Predicated region
    $region30: #{tpu_custom_call.1} parent=1 // pred_check
      %p56 = pneg %p55
    $region31: #{tpu_custom_call.1} parent=1 // pred_check_branch
      %58 = sbr.rel (%p56) target = $region33
    $region32: #{tpu_custom_call.1} parent=1 // pred_region
      %v59 = vld [vmem:[%s3] sm:$0xff]
      %61 = vset.pattern.permute.xlu0 0
      %62 = vperm.xlu0 %61, %v59
      %v63 = vpop.permute.xlu0 %62
      %vm65 = vcmask 64512
      %66 = vst.msk [vmem:[#allocation2] sm:$0xff] %vm65, %v63
    $region33: #{tpu_custom_call.1} parent=1 // pred_fallthru
      _
    %v67 = vld [vmem:[#allocation3] sm:$0xff]
    %v68 = vld [vmem:[#allocation3 + $0x8] sm:$0xff]
    %v69 = vld [vmem:[#allocation3 + $0x10] sm:$0xff]
    %v70 = vld [vmem:[#allocation3 + $0x18] sm:$0xff]
    %v71 = vld [vmem:[#allocation3 + $0x20] sm:$0xff]
    %v72 = vld [vmem:[#allocation3 + $0x28] sm:$0xff]
    %v73 = vld [vmem:[#allocation3 + $0x30] sm:$0xff]
    %v74 = vld [vmem:[#allocation3 + $0x38] sm:$0xff]
    %v75 = vld [vmem:[#allocation6] sm:$0xff]
    %v76 = vld [vmem:[#allocation6 + $0x8] sm:$0xff]
    %v77 = vld [vmem:[#allocation6 + $0x10] sm:$0xff]
    %v78 = vld [vmem:[#allocation6 + $0x18] sm:$0xff]
    %v79 = vld [vmem:[#allocation6 + $0x20] sm:$0xff]
    %v80 = vld [vmem:[#allocation6 + $0x28] sm:$0xff]
    %v81 = vld [vmem:[#allocation6 + $0x30] sm:$0xff]
    %v82 = vld [vmem:[#allocation6 + $0x38] sm:$0xff]
    %v83 = vld [vmem:[#allocation8] sm:$0xff]
    %v84 = vld [vmem:[#allocation8 + $0x8] sm:$0xff]
    %v85 = vld [vmem:[#allocation8 + $0x10] sm:$0xff]
    %v86 = vld [vmem:[#allocation8 + $0x18] sm:$0xff]
    %v87 = vld [vmem:[#allocation8 + $0x20] sm:$0xff]
    %v88 = vld [vmem:[#allocation8 + $0x28] sm:$0xff]
    %v89 = vld [vmem:[#allocation8 + $0x30] sm:$0xff]
    %v90 = vld [vmem:[#allocation8 + $0x38] sm:$0xff]
    %v91 = vmul.f32 %v67, %v67
    %v92 = vmul.f32 %v68, %v68
    %v93 = vmul.f32 %v69, %v69
    %v94 = vmul.f32 %v70, %v70
    %v95 = vmul.f32 %v71, %v71
    %v96 = vmul.f32 %v72, %v72
    %v97 = vmul.f32 %v73, %v73
    %v98 = vmul.f32 %v74, %v74
    %v107 = vcombine.low %v67, %v69
    %v108 = vcombine.high %v67, %v69
    %v109 = vcombine.low %v71, %v73
    %v110 = vcombine.high %v71, %v73
    %v112 = vunpack.c.l.s4 1983009808
    %v113 = vunpack.c.0.s8 %v112
    %v114 = vlaneseq
    %v115 = vshrl.u32 %v114, 7
    %v116 = vsub.s32 %v113, %v115
    %v117 = vrot.slane %v107, %v116
    %v119 = vunpack.c.l.s4 1983009808
    %v120 = vunpack.c.0.s8 %v119
    %v121 = vlaneseq
    %v122 = vshrl.u32 %v121, 7
    %v123 = vsub.s32 %v120, %v122
    %v124 = vrot.slane %v108, %v123
    %v126 = vunpack.c.l.s4 1983009808
    %v127 = vunpack.c.0.s8 %v126
    %v128 = vlaneseq
    %v129 = vshrl.u32 %v128, 7
    %v130 = vsub.s32 %v127, %v129
    %v131 = vrot.slane %v109, %v130
    %v133 = vunpack.c.l.s4 1983009808
    %v134 = vunpack.c.0.s8 %v133
    %v135 = vlaneseq
    %v136 = vshrl.u32 %v135, 7
    %v137 = vsub.s32 %v134, %v136
    %v138 = vrot.slane %v110, %v137
    %v139 = vcombine.low %v117, %v131
    %v140 = vcombine.high %v117, %v131
    %v141 = vcombine.low %v124, %v138
    %v142 = vcombine.high %v124, %v138
    %v143 = vcombine.low %v68, %v70
    %v144 = vcombine.high %v68, %v70
    %v145 = vcombine.low %v72, %v74
    %v146 = vcombine.high %v72, %v74
    %v148 = vunpack.c.l.s4 1983009808
    %v149 = vunpack.c.0.s8 %v148
    %v150 = vlaneseq
    %v151 = vshrl.u32 %v150, 7
    %v152 = vsub.s32 %v149, %v151
    %v153 = vrot.slane %v143, %v152
    %v155 = vunpack.c.l.s4 1983009808
    %v156 = vunpack.c.0.s8 %v155
    %v157 = vlaneseq
    %v158 = vshrl.u32 %v157, 7
    %v159 = vsub.s32 %v156, %v158
    %v160 = vrot.slane %v144, %v159
    %v162 = vunpack.c.l.s4 1983009808
    %v163 = vunpack.c.0.s8 %v162
    %v164 = vlaneseq
    %v165 = vshrl.u32 %v164, 7
    %v166 = vsub.s32 %v163, %v165
    %v167 = vrot.slane %v145, %v166
    %v169 = vunpack.c.l.s4 1983009808
    %v170 = vunpack.c.0.s8 %v169
    %v171 = vlaneseq
    %v172 = vshrl.u32 %v171, 7
    %v173 = vsub.s32 %v170, %v172
    %v174 = vrot.slane %v146, %v173
    %v175 = vcombine.low %v153, %v167
    %v176 = vcombine.high %v153, %v167
    %v177 = vcombine.low %v160, %v174
    %v178 = vcombine.high %v160, %v174
    %187 = vmatprep.subr.mxu0 %v140
    %188 = vmatpush1.xpose.msra.mxu0 %v139
    %189 = vmatprep.subr.mxu0 0.0
    %190 = vmatpush1.xpose.msra.mxu0 0.0
    %191 = vmatprep.subr.mxu0 0.0
    %192 = vmatpush1.xpose.msra.mxu0 0.0
    %193 = vmatprep.subr.mxu0 0.0
    %194 = vmatpush1.xpose.msra.mxu0 0.0
    %195 = vmatprep.subr.mxu0 0.0
    %196 = vmatpush1.xpose.msra.mxu0 0.0
    %197 = vmatprep.subr.mxu0 0.0
    %198 = vmatpush1.xpose.msra.mxu0 0.0
    %199 = vmatprep.subr.mxu0 0.0
    %200 = vmatpush1.xpose.msra.mxu0 0.0
    %201 = vmatprep.subr.mxu0 0.0
    %202 = vmatpush1.xpose.msra.mxu0 0.0
    %203 = vmatprep.subr.mxu0 0.0
    %204 = vmatpush1.xpose.msra.mxu0 0.0
    %205 = vmatprep.subr.mxu0 0.0
    %206 = vmatpush1.xpose.msra.mxu0 0.0
    %207 = vmatprep.subr.mxu0 0.0
    %208 = vmatpush1.xpose.msra.mxu0 0.0
    %209 = vmatprep.subr.mxu0 0.0
    %210 = vmatpush1.xpose.msra.mxu0 0.0
    %211 = vmatprep.subr.mxu0 0.0
    %212 = vmatpush1.xpose.msra.mxu0 0.0
    %213 = vmatprep.subr.mxu0 0.0
    %214 = vmatpush1.xpose.msra.mxu0 0.0
    %215 = vmatprep.subr.mxu0 0.0
    %216 = vmatpush1.xpose.msra.mxu0 0.0
    %217 = vmatprep.subr.mxu0 0.0
    %218 = vmatpush1.xpose.msra.mxu0 0.0
    %219 = vmatprep.subr.mxu0 0.0
    %220 = vmatpush1.xpose.msra.mxu0 0.0
    %221 = vmatprep.subr.mxu0 0.0
    %222 = vmatpush1.xpose.msra.mxu0 0.0
    %223 = vmatprep.subr.mxu0 0.0
    %224 = vmatpush1.xpose.msra.mxu0 0.0
    %225 = vmatprep.subr.mxu0 0.0
    %226 = vmatpush1.xpose.msra.mxu0 0.0
    %227 = vmatprep.subr.mxu0 0.0
    %228 = vmatpush1.xpose.msra.mxu0 0.0
    %229 = vmatprep.subr.mxu0 0.0
    %230 = vmatpush1.xpose.msra.mxu0 0.0
    %231 = vmatprep.subr.mxu0 0.0
    %232 = vmatpush1.xpose.msra.mxu0 0.0
    %233 = vmatprep.subr.mxu0 0.0
    %234 = vmatpush1.xpose.msra.mxu0 0.0
    %235 = vmatprep.subr.mxu0 0.0
    %236 = vmatpush1.xpose.msra.mxu0 0.0
    %237 = vmatprep.subr.mxu0 0.0
    %238 = vmatpush1.xpose.msra.mxu0 0.0
    %239 = vmatprep.subr.mxu0 0.0
    %240 = vmatpush1.xpose.msra.mxu0 0.0
    %241 = vmatprep.subr.mxu0 0.0
    %242 = vmatpush1.xpose.msra.mxu0 0.0
    %243 = vmatprep.subr.mxu0 0.0
    %244 = vmatpush1.xpose.msra.mxu0 0.0
    %245 = vmatprep.subr.mxu0 0.0
    %246 = vmatpush1.xpose.msra.mxu0 0.0
    %247 = vmatprep.subr.mxu0 0.0
    %248 = vmatpush1.xpose.msra.mxu0 0.0
    %249 = vmatprep.subr.mxu0 0.0
    %250 = vmatpush1.xpose.msra.mxu0 0.0
    %251 = vmatprep.mubr.f32.mxu0 %v84
    %252 = vmatmul.mubr.f32.gmra.mrb[0].mxu0 %v83
    %v253 = vpop.f32.mrb[0].mxu0
    %v254 = vadd.f32 0.0, %v253
    %v255 = vpop.f32.mrb[0].mxu0
    %256 = vdwg.mxu0
    %257 = vmatprep.subr.mxu0 %v142
    %258 = vmatpush1.xpose.msra.mxu0 %v141
    %259 = vmatprep.subr.mxu0 0.0
    %260 = vmatpush1.xpose.msra.mxu0 0.0
    %261 = vmatprep.subr.mxu0 0.0
    %262 = vmatpush1.xpose.msra.mxu0 0.0
    %263 = vmatprep.subr.mxu0 0.0
    %264 = vmatpush1.xpose.msra.mxu0 0.0
    %265 = vmatprep.subr.mxu0 0.0
    %266 = vmatpush1.xpose.msra.mxu0 0.0
    %267 = vmatprep.subr.mxu0 0.0
    %268 = vmatpush1.xpose.msra.mxu0 0.0
    %269 = vmatprep.subr.mxu0 0.0
    %270 = vmatpush1.xpose.msra.mxu0 0.0
    %271 = vmatprep.subr.mxu0 0.0
    %272 = vmatpush1.xpose.msra.mxu0 0.0
    %273 = vmatprep.subr.mxu0 0.0
    %274 = vmatpush1.xpose.msra.mxu0 0.0
    %275 = vmatprep.subr.mxu0 0.0
    %276 = vmatpush1.xpose.msra.mxu0 0.0
    %277 = vmatprep.subr.mxu0 0.0
    %278 = vmatpush1.xpose.msra.mxu0 0.0
    %279 = vmatprep.subr.mxu0 0.0
    %280 = vmatpush1.xpose.msra.mxu0 0.0
    %281 = vmatprep.subr.mxu0 0.0
    %282 = vmatpush1.xpose.msra.mxu0 0.0
    %283 = vmatprep.subr.mxu0 0.0
    %284 = vmatpush1.xpose.msra.mxu0 0.0
    %285 = vmatprep.subr.mxu0 0.0
    %286 = vmatpush1.xpose.msra.mxu0 0.0
    %287 = vmatprep.subr.mxu0 0.0
    %288 = vmatpush1.xpose.msra.mxu0 0.0
    %289 = vmatprep.subr.mxu0 0.0
    %290 = vmatpush1.xpose.msra.mxu0 0.0
    %291 = vmatprep.subr.mxu0 0.0
    %292 = vmatpush1.xpose.msra.mxu0 0.0
    %293 = vmatprep.subr.mxu0 0.0
    %294 = vmatpush1.xpose.msra.mxu0 0.0
    %295 = vmatprep.subr.mxu0 0.0
    %296 = vmatpush1.xpose.msra.mxu0 0.0
    %297 = vmatprep.subr.mxu0 0.0
    %298 = vmatpush1.xpose.msra.mxu0 0.0
    %299 = vmatprep.subr.mxu0 0.0
    %300 = vmatpush1.xpose.msra.mxu0 0.0
    %301 = vmatprep.subr.mxu0 0.0
    %302 = vmatpush1.xpose.msra.mxu0 0.0
    %303 = vmatprep.subr.mxu0 0.0
    %304 = vmatpush1.xpose.msra.mxu0 0.0
    %305 = vmatprep.subr.mxu0 0.0
    %306 = vmatpush1.xpose.msra.mxu0 0.0
    %307 = vmatprep.subr.mxu0 0.0
    %308 = vmatpush1.xpose.msra.mxu0 0.0
    %309 = vmatprep.subr.mxu0 0.0
    %310 = vmatpush1.xpose.msra.mxu0 0.0
    %311 = vmatprep.subr.mxu0 0.0
    %312 = vmatpush1.xpose.msra.mxu0 0.0
    %313 = vmatprep.subr.mxu0 0.0
    %314 = vmatpush1.xpose.msra.mxu0 0.0
    %315 = vmatprep.subr.mxu0 0.0
    %316 = vmatpush1.xpose.msra.mxu0 0.0
    %317 = vmatprep.subr.mxu0 0.0
    %318 = vmatpush1.xpose.msra.mxu0 0.0
    %319 = vmatprep.subr.mxu0 0.0
    %320 = vmatpush1.xpose.msra.mxu0 0.0
    %321 = vmatprep.mubr.f32.mxu0 %v86
    %322 = vmatmul.mubr.f32.gmra.mrb[0].mxu0 %v85
    %v323 = vpop.f32.mrb[0].mxu0
    %v324 = vadd.f32 %v254, %v323
    %v325 = vpop.f32.mrb[0].mxu0
    %326 = vdwg.mxu0
    %327 = vmatprep.subr.mxu0 %v176
    %328 = vmatpush1.xpose.msra.mxu0 %v175
    %329 = vmatprep.subr.mxu0 0.0
    %330 = vmatpush1.xpose.msra.mxu0 0.0
    %331 = vmatprep.subr.mxu0 0.0
    %332 = vmatpush1.xpose.msra.mxu0 0.0
    %333 = vmatprep.subr.mxu0 0.0
    %334 = vmatpush1.xpose.msra.mxu0 0.0
    %335 = vmatprep.subr.mxu0 0.0
    %336 = vmatpush1.xpose.msra.mxu0 0.0
    %337 = vmatprep.subr.mxu0 0.0
    %338 = vmatpush1.xpose.msra.mxu0 0.0
    %339 = vmatprep.subr.mxu0 0.0
    %340 = vmatpush1.xpose.msra.mxu0 0.0
    %341 = vmatprep.subr.mxu0 0.0
    %342 = vmatpush1.xpose.msra.mxu0 0.0
    %343 = vmatprep.subr.mxu0 0.0
    %344 = vmatpush1.xpose.msra.mxu0 0.0
    %345 = vmatprep.subr.mxu0 0.0
    %346 = vmatpush1.xpose.msra.mxu0 0.0
    %347 = vmatprep.subr.mxu0 0.0
    %348 = vmatpush1.xpose.msra.mxu0 0.0
    %349 = vmatprep.subr.mxu0 0.0
    %350 = vmatpush1.xpose.msra.mxu0 0.0
    %351 = vmatprep.subr.mxu0 0.0
    %352 = vmatpush1.xpose.msra.mxu0 0.0
    %353 = vmatprep.subr.mxu0 0.0
    %354 = vmatpush1.xpose.msra.mxu0 0.0
    %355 = vmatprep.subr.mxu0 0.0
    %356 = vmatpush1.xpose.msra.mxu0 0.0
    %357 = vmatprep.subr.mxu0 0.0
    %358 = vmatpush1.xpose.msra.mxu0 0.0
    %359 = vmatprep.subr.mxu0 0.0
    %360 = vmatpush1.xpose.msra.mxu0 0.0
    %361 = vmatprep.subr.mxu0 0.0
    %362 = vmatpush1.xpose.msra.mxu0 0.0
    %363 = vmatprep.subr.mxu0 0.0
    %364 = vmatpush1.xpose.msra.mxu0 0.0
    %365 = vmatprep.subr.mxu0 0.0
    %366 = vmatpush1.xpose.msra.mxu0 0.0
    %367 = vmatprep.subr.mxu0 0.0
    %368 = vmatpush1.xpose.msra.mxu0 0.0
    %369 = vmatprep.subr.mxu0 0.0
    %370 = vmatpush1.xpose.msra.mxu0 0.0
    %371 = vmatprep.subr.mxu0 0.0
    %372 = vmatpush1.xpose.msra.mxu0 0.0
    %373 = vmatprep.subr.mxu0 0.0
    %374 = vmatpush1.xpose.msra.mxu0 0.0
    %375 = vmatprep.subr.mxu0 0.0
    %376 = vmatpush1.xpose.msra.mxu0 0.0
    %377 = vmatprep.subr.mxu0 0.0
    %378 = vmatpush1.xpose.msra.mxu0 0.0
    %379 = vmatprep.subr.mxu0 0.0
    %380 = vmatpush1.xpose.msra.mxu0 0.0
    %381 = vmatprep.subr.mxu0 0.0
    %382 = vmatpush1.xpose.msra.mxu0 0.0
    %383 = vmatprep.subr.mxu0 0.0
    %384 = vmatpush1.xpose.msra.mxu0 0.0
    %385 = vmatprep.subr.mxu0 0.0
    %386 = vmatpush1.xpose.msra.mxu0 0.0
    %387 = vmatprep.subr.mxu0 0.0
    %388 = vmatpush1.xpose.msra.mxu0 0.0
    %389 = vmatprep.subr.mxu0 0.0
    %390 = vmatpush1.xpose.msra.mxu0 0.0
    %391 = vmatprep.mubr.f32.mxu0 %v88
    %392 = vmatmul.mubr.f32.gmra.mrb[0].mxu0 %v87
    %v393 = vpop.f32.mrb[0].mxu0
    %v394 = vadd.f32 %v324, %v393
    %v395 = vpop.f32.mrb[0].mxu0
    %396 = vdwg.mxu0
    %397 = vmatprep.subr.mxu0 %v178
    %398 = vmatpush1.xpose.msra.mxu0 %v177
    %399 = vmatprep.subr.mxu0 0.0
    %400 = vmatpush1.xpose.msra.mxu0 0.0
    %401 = vmatprep.subr.mxu0 0.0
    %402 = vmatpush1.xpose.msra.mxu0 0.0
    %403 = vmatprep.subr.mxu0 0.0
    %404 = vmatpush1.xpose.msra.mxu0 0.0
    %405 = vmatprep.subr.mxu0 0.0
    %406 = vmatpush1.xpose.msra.mxu0 0.0
    %407 = vmatprep.subr.mxu0 0.0
    %408 = vmatpush1.xpose.msra.mxu0 0.0
    %409 = vmatprep.subr.mxu0 0.0
    %410 = vmatpush1.xpose.msra.mxu0 0.0
    %411 = vmatprep.subr.mxu0 0.0
    %412 = vmatpush1.xpose.msra.mxu0 0.0
    %413 = vmatprep.subr.mxu0 0.0
    %414 = vmatpush1.xpose.msra.mxu0 0.0
    %415 = vmatprep.subr.mxu0 0.0
    %416 = vmatpush1.xpose.msra.mxu0 0.0
    %417 = vmatprep.subr.mxu0 0.0
    %418 = vmatpush1.xpose.msra.mxu0 0.0
    %419 = vmatprep.subr.mxu0 0.0
    %420 = vmatpush1.xpose.msra.mxu0 0.0
    %421 = vmatprep.subr.mxu0 0.0
    %422 = vmatpush1.xpose.msra.mxu0 0.0
    %423 = vmatprep.subr.mxu0 0.0
    %424 = vmatpush1.xpose.msra.mxu0 0.0
    %425 = vmatprep.subr.mxu0 0.0
    %426 = vmatpush1.xpose.msra.mxu0 0.0
    %427 = vmatprep.subr.mxu0 0.0
    %428 = vmatpush1.xpose.msra.mxu0 0.0
    %429 = vmatprep.subr.mxu0 0.0
    %430 = vmatpush1.xpose.msra.mxu0 0.0
    %431 = vmatprep.subr.mxu0 0.0
    %432 = vmatpush1.xpose.msra.mxu0 0.0
    %433 = vmatprep.subr.mxu0 0.0
    %434 = vmatpush1.xpose.msra.mxu0 0.0
    %435 = vmatprep.subr.mxu0 0.0
    %436 = vmatpush1.xpose.msra.mxu0 0.0
    %437 = vmatprep.subr.mxu0 0.0
    %438 = vmatpush1.xpose.msra.mxu0 0.0
    %439 = vmatprep.subr.mxu0 0.0
    %440 = vmatpush1.xpose.msra.mxu0 0.0
    %441 = vmatprep.subr.mxu0 0.0
    %442 = vmatpush1.xpose.msra.mxu0 0.0
    %443 = vmatprep.subr.mxu0 0.0
    %444 = vmatpush1.xpose.msra.mxu0 0.0
    %445 = vmatprep.subr.mxu0 0.0
    %446 = vmatpush1.xpose.msra.mxu0 0.0
    %447 = vmatprep.subr.mxu0 0.0
    %448 = vmatpush1.xpose.msra.mxu0 0.0
    %449 = vmatprep.subr.mxu0 0.0
    %450 = vmatpush1.xpose.msra.mxu0 0.0
    %451 = vmatprep.subr.mxu0 0.0
    %452 = vmatpush1.xpose.msra.mxu0 0.0
    %453 = vmatprep.subr.mxu0 0.0
    %454 = vmatpush1.xpose.msra.mxu0 0.0
    %455 = vmatprep.subr.mxu0 0.0
    %456 = vmatpush1.xpose.msra.mxu0 0.0
    %457 = vmatprep.subr.mxu0 0.0
    %458 = vmatpush1.xpose.msra.mxu0 0.0
    %459 = vmatprep.subr.mxu0 0.0
    %460 = vmatpush1.xpose.msra.mxu0 0.0
    %461 = vmatprep.mubr.f32.mxu0 %v90
    %462 = vmatmul.mubr.f32.gmra.mrb[0].mxu0 %v89
    %v463 = vpop.f32.mrb[0].mxu0
    %v464 = vadd.f32 %v394, %v463
    %v465 = vpop.f32.mrb[0].mxu0
    %466 = vdwg.mxu0
    %v467 = vld [vmem:[#allocation2] sm:$0xff]
    %v476 = vcombine.low %v91, %v93
    %v477 = vcombine.high %v91, %v93
    %v478 = vcombine.low %v95, %v97
    %v479 = vcombine.high %v95, %v97
    %v481 = vunpack.c.l.s4 1983009808
    %v482 = vunpack.c.0.s8 %v481
    %v483 = vlaneseq
    %v484 = vshrl.u32 %v483, 7
    %v485 = vsub.s32 %v482, %v484
    %v486 = vrot.slane %v476, %v485
    %v488 = vunpack.c.l.s4 1983009808
    %v489 = vunpack.c.0.s8 %v488
    %v490 = vlaneseq
    %v491 = vshrl.u32 %v490, 7
    %v492 = vsub.s32 %v489, %v491
    %v493 = vrot.slane %v477, %v492
    %v495 = vunpack.c.l.s4 1983009808
    %v496 = vunpack.c.0.s8 %v495
    %v497 = vlaneseq
    %v498 = vshrl.u32 %v497, 7
    %v499 = vsub.s32 %v496, %v498
    %v500 = vrot.slane %v478, %v499
    %v502 = vunpack.c.l.s4 1983009808
    %v503 = vunpack.c.0.s8 %v502
    %v504 = vlaneseq
    %v505 = vshrl.u32 %v504, 7
    %v506 = vsub.s32 %v503, %v505
    %v507 = vrot.slane %v479, %v506
    %v508 = vcombine.low %v486, %v500
    %v509 = vcombine.high %v486, %v500
    %v510 = vcombine.low %v493, %v507
    %v511 = vcombine.high %v493, %v507
    %v512 = vcombine.low %v92, %v94
    %v513 = vcombine.high %v92, %v94
    %v514 = vcombine.low %v96, %v98
    %v515 = vcombine.high %v96, %v98
    %v517 = vunpack.c.l.s4 1983009808
    %v518 = vunpack.c.0.s8 %v517
    %v519 = vlaneseq
    %v520 = vshrl.u32 %v519, 7
    %v521 = vsub.s32 %v518, %v520
    %v522 = vrot.slane %v512, %v521
    %v524 = vunpack.c.l.s4 1983009808
    %v525 = vunpack.c.0.s8 %v524
    %v526 = vlaneseq
    %v527 = vshrl.u32 %v526, 7
    %v528 = vsub.s32 %v525, %v527
    %v529 = vrot.slane %v513, %v528
    %v531 = vunpack.c.l.s4 1983009808
    %v532 = vunpack.c.0.s8 %v531
    %v533 = vlaneseq
    %v534 = vshrl.u32 %v533, 7
    %v535 = vsub.s32 %v532, %v534
    %v536 = vrot.slane %v514, %v535
    %v538 = vunpack.c.l.s4 1983009808
    %v539 = vunpack.c.0.s8 %v538
    %v540 = vlaneseq
    %v541 = vshrl.u32 %v540, 7
    %v542 = vsub.s32 %v539, %v541
    %v543 = vrot.slane %v515, %v542
    %v544 = vcombine.low %v522, %v536
    %v545 = vcombine.high %v522, %v536
    %v546 = vcombine.low %v529, %v543
    %v547 = vcombine.high %v529, %v543
    %556 = vmatprep.subr.mxu0 %v509
    %557 = vmatpush1.xpose.msra.mxu0 %v508
    %558 = vmatprep.subr.mxu0 0.0
    %559 = vmatpush1.xpose.msra.mxu0 0.0
    %560 = vmatprep.subr.mxu0 0.0
    %561 = vmatpush1.xpose.msra.mxu0 0.0
    %562 = vmatprep.subr.mxu0 0.0
    %563 = vmatpush1.xpose.msra.mxu0 0.0
    %564 = vmatprep.subr.mxu0 0.0
    %565 = vmatpush1.xpose.msra.mxu0 0.0
    %566 = vmatprep.subr.mxu0 0.0
    %567 = vmatpush1.xpose.msra.mxu0 0.0
    %568 = vmatprep.subr.mxu0 0.0
    %569 = vmatpush1.xpose.msra.mxu0 0.0
    %570 = vmatprep.subr.mxu0 0.0
    %571 = vmatpush1.xpose.msra.mxu0 0.0
    %572 = vmatprep.subr.mxu0 0.0
    %573 = vmatpush1.xpose.msra.mxu0 0.0
    %574 = vmatprep.subr.mxu0 0.0
    %575 = vmatpush1.xpose.msra.mxu0 0.0
    %576 = vmatprep.subr.mxu0 0.0
    %577 = vmatpush1.xpose.msra.mxu0 0.0
    %578 = vmatprep.subr.mxu0 0.0
    %579 = vmatpush1.xpose.msra.mxu0 0.0
    %580 = vmatprep.subr.mxu0 0.0
    %581 = vmatpush1.xpose.msra.mxu0 0.0
    %582 = vmatprep.subr.mxu0 0.0
    %583 = vmatpush1.xpose.msra.mxu0 0.0
    %584 = vmatprep.subr.mxu0 0.0
    %585 = vmatpush1.xpose.msra.mxu0 0.0
    %586 = vmatprep.subr.mxu0 0.0
    %587 = vmatpush1.xpose.msra.mxu0 0.0
    %588 = vmatprep.subr.mxu0 0.0
    %589 = vmatpush1.xpose.msra.mxu0 0.0
    %590 = vmatprep.subr.mxu0 0.0
    %591 = vmatpush1.xpose.msra.mxu0 0.0
    %592 = vmatprep.subr.mxu0 0.0
    %593 = vmatpush1.xpose.msra.mxu0 0.0
    %594 = vmatprep.subr.mxu0 0.0
    %595 = vmatpush1.xpose.msra.mxu0 0.0
    %596 = vmatprep.subr.mxu0 0.0
    %597 = vmatpush1.xpose.msra.mxu0 0.0
    %598 = vmatprep.subr.mxu0 0.0
    %599 = vmatpush1.xpose.msra.mxu0 0.0
    %600 = vmatprep.subr.mxu0 0.0
    %601 = vmatpush1.xpose.msra.mxu0 0.0
    %602 = vmatprep.subr.mxu0 0.0
    %603 = vmatpush1.xpose.msra.mxu0 0.0
    %604 = vmatprep.subr.mxu0 0.0
    %605 = vmatpush1.xpose.msra.mxu0 0.0
    %606 = vmatprep.subr.mxu0 0.0
    %607 = vmatpush1.xpose.msra.mxu0 0.0
    %608 = vmatprep.subr.mxu0 0.0
    %609 = vmatpush1.xpose.msra.mxu0 0.0
    %610 = vmatprep.subr.mxu0 0.0
    %611 = vmatpush1.xpose.msra.mxu0 0.0
    %612 = vmatprep.subr.mxu0 0.0
    %613 = vmatpush1.xpose.msra.mxu0 0.0
    %614 = vmatprep.subr.mxu0 0.0
    %615 = vmatpush1.xpose.msra.mxu0 0.0
    %616 = vmatprep.subr.mxu0 0.0
    %617 = vmatpush1.xpose.msra.mxu0 0.0
    %618 = vmatprep.subr.mxu0 0.0
    %619 = vmatpush1.xpose.msra.mxu0 0.0
    %620 = vmatprep.mubr.f32.mxu0 %v76
    %621 = vmatmul.mubr.f32.gmra.mrb[0].mxu0 %v75
    %v622 = vpop.f32.mrb[0].mxu0
    %v623 = vadd.f32 %v464, %v622
    %v624 = vpop.f32.mrb[0].mxu0
    %625 = vdwg.mxu0
    %626 = vmatprep.subr.mxu0 %v511
    %627 = vmatpush1.xpose.msra.mxu0 %v510
    %628 = vmatprep.subr.mxu0 0.0
    %629 = vmatpush1.xpose.msra.mxu0 0.0
    %630 = vmatprep.subr.mxu0 0.0
    %631 = vmatpush1.xpose.msra.mxu0 0.0
    %632 = vmatprep.subr.mxu0 0.0
    %633 = vmatpush1.xpose.msra.mxu0 0.0
    %634 = vmatprep.subr.mxu0 0.0
    %635 = vmatpush1.xpose.msra.mxu0 0.0
    %636 = vmatprep.subr.mxu0 0.0
    %637 = vmatpush1.xpose.msra.mxu0 0.0
    %638 = vmatprep.subr.mxu0 0.0
    %639 = vmatpush1.xpose.msra.mxu0 0.0
    %640 = vmatprep.subr.mxu0 0.0
    %641 = vmatpush1.xpose.msra.mxu0 0.0
    %642 = vmatprep.subr.mxu0 0.0
    %643 = vmatpush1.xpose.msra.mxu0 0.0
    %644 = vmatprep.subr.mxu0 0.0
    %645 = vmatpush1.xpose.msra.mxu0 0.0
    %646 = vmatprep.subr.mxu0 0.0
    %647 = vmatpush1.xpose.msra.mxu0 0.0
    %648 = vmatprep.subr.mxu0 0.0
    %649 = vmatpush1.xpose.msra.mxu0 0.0
    %650 = vmatprep.subr.mxu0 0.0
    %651 = vmatpush1.xpose.msra.mxu0 0.0
    %652 = vmatprep.subr.mxu0 0.0
    %653 = vmatpush1.xpose.msra.mxu0 0.0
    %654 = vmatprep.subr.mxu0 0.0
    %655 = vmatpush1.xpose.msra.mxu0 0.0
    %656 = vmatprep.subr.mxu0 0.0
    %657 = vmatpush1.xpose.msra.mxu0 0.0
    %658 = vmatprep.subr.mxu0 0.0
    %659 = vmatpush1.xpose.msra.mxu0 0.0
    %660 = vmatprep.subr.mxu0 0.0
    %661 = vmatpush1.xpose.msra.mxu0 0.0
    %662 = vmatprep.subr.mxu0 0.0
    %663 = vmatpush1.xpose.msra.mxu0 0.0
    %664 = vmatprep.subr.mxu0 0.0
    %665 = vmatpush1.xpose.msra.mxu0 0.0
    %666 = vmatprep.subr.mxu0 0.0
    %667 = vmatpush1.xpose.msra.mxu0 0.0
    %668 = vmatprep.subr.mxu0 0.0
    %669 = vmatpush1.xpose.msra.mxu0 0.0
    %670 = vmatprep.subr.mxu0 0.0
    %671 = vmatpush1.xpose.msra.mxu0 0.0
    %672 = vmatprep.subr.mxu0 0.0
    %673 = vmatpush1.xpose.msra.mxu0 0.0
    %674 = vmatprep.subr.mxu0 0.0
    %675 = vmatpush1.xpose.msra.mxu0 0.0
    %676 = vmatprep.subr.mxu0 0.0
    %677 = vmatpush1.xpose.msra.mxu0 0.0
    %678 = vmatprep.subr.mxu0 0.0
    %679 = vmatpush1.xpose.msra.mxu0 0.0
    %680 = vmatprep.subr.mxu0 0.0
    %681 = vmatpush1.xpose.msra.mxu0 0.0
    %682 = vmatprep.subr.mxu0 0.0
    %683 = vmatpush1.xpose.msra.mxu0 0.0
    %684 = vmatprep.subr.mxu0 0.0
    %685 = vmatpush1.xpose.msra.mxu0 0.0
    %686 = vmatprep.subr.mxu0 0.0
    %687 = vmatpush1.xpose.msra.mxu0 0.0
    %688 = vmatprep.subr.mxu0 0.0
    %689 = vmatpush1.xpose.msra.mxu0 0.0
    %690 = vmatprep.mubr.f32.mxu0 %v78
    %691 = vmatmul.mubr.f32.gmra.mrb[0].mxu0 %v77
    %v692 = vpop.f32.mrb[0].mxu0
    %v693 = vadd.f32 %v623, %v692
    %v694 = vpop.f32.mrb[0].mxu0
    %695 = vdwg.mxu0
    %696 = vmatprep.subr.mxu0 %v545
    %697 = vmatpush1.xpose.msra.mxu0 %v544
    %698 = vmatprep.subr.mxu0 0.0
    %699 = vmatpush1.xpose.msra.mxu0 0.0
    %700 = vmatprep.subr.mxu0 0.0
    %701 = vmatpush1.xpose.msra.mxu0 0.0
    %702 = vmatprep.subr.mxu0 0.0
    %703 = vmatpush1.xpose.msra.mxu0 0.0
    %704 = vmatprep.subr.mxu0 0.0
    %705 = vmatpush1.xpose.msra.mxu0 0.0
    %706 = vmatprep.subr.mxu0 0.0
    %707 = vmatpush1.xpose.msra.mxu0 0.0
    %708 = vmatprep.subr.mxu0 0.0
    %709 = vmatpush1.xpose.msra.mxu0 0.0
    %710 = vmatprep.subr.mxu0 0.0
    %711 = vmatpush1.xpose.msra.mxu0 0.0
    %712 = vmatprep.subr.mxu0 0.0
    %713 = vmatpush1.xpose.msra.mxu0 0.0
    %714 = vmatprep.subr.mxu0 0.0
    %715 = vmatpush1.xpose.msra.mxu0 0.0
    %716 = vmatprep.subr.mxu0 0.0
    %717 = vmatpush1.xpose.msra.mxu0 0.0
    %718 = vmatprep.subr.mxu0 0.0
    %719 = vmatpush1.xpose.msra.mxu0 0.0
    %720 = vmatprep.subr.mxu0 0.0
    %721 = vmatpush1.xpose.msra.mxu0 0.0
    %722 = vmatprep.subr.mxu0 0.0
    %723 = vmatpush1.xpose.msra.mxu0 0.0
    %724 = vmatprep.subr.mxu0 0.0
    %725 = vmatpush1.xpose.msra.mxu0 0.0
    %726 = vmatprep.subr.mxu0 0.0
    %727 = vmatpush1.xpose.msra.mxu0 0.0
    %728 = vmatprep.subr.mxu0 0.0
    %729 = vmatpush1.xpose.msra.mxu0 0.0
    %730 = vmatprep.subr.mxu0 0.0
    %731 = vmatpush1.xpose.msra.mxu0 0.0
    %732 = vmatprep.subr.mxu0 0.0
    %733 = vmatpush1.xpose.msra.mxu0 0.0
    %734 = vmatprep.subr.mxu0 0.0
    %735 = vmatpush1.xpose.msra.mxu0 0.0
    %736 = vmatprep.subr.mxu0 0.0
    %737 = vmatpush1.xpose.msra.mxu0 0.0
    %738 = vmatprep.subr.mxu0 0.0
    %739 = vmatpush1.xpose.msra.mxu0 0.0
    %740 = vmatprep.subr.mxu0 0.0
    %741 = vmatpush1.xpose.msra.mxu0 0.0
    %742 = vmatprep.subr.mxu0 0.0
    %743 = vmatpush1.xpose.msra.mxu0 0.0
    %744 = vmatprep.subr.mxu0 0.0
    %745 = vmatpush1.xpose.msra.mxu0 0.0
    %746 = vmatprep.subr.mxu0 0.0
    %747 = vmatpush1.xpose.msra.mxu0 0.0
    %748 = vmatprep.subr.mxu0 0.0
    %749 = vmatpush1.xpose.msra.mxu0 0.0
    %750 = vmatprep.subr.mxu0 0.0
    %751 = vmatpush1.xpose.msra.mxu0 0.0
    %752 = vmatprep.subr.mxu0 0.0
    %753 = vmatpush1.xpose.msra.mxu0 0.0
    %754 = vmatprep.subr.mxu0 0.0
    %755 = vmatpush1.xpose.msra.mxu0 0.0
    %756 = vmatprep.subr.mxu0 0.0
    %757 = vmatpush1.xpose.msra.mxu0 0.0
    %758 = vmatprep.subr.mxu0 0.0
    %759 = vmatpush1.xpose.msra.mxu0 0.0
    %760 = vmatprep.mubr.f32.mxu0 %v80
    %761 = vmatmul.mubr.f32.gmra.mrb[0].mxu0 %v79
    %v762 = vpop.f32.mrb[0].mxu0
    %v763 = vadd.f32 %v693, %v762
    %v764 = vpop.f32.mrb[0].mxu0
    %765 = vdwg.mxu0
    %766 = vmatprep.subr.mxu0 %v547
    %767 = vmatpush1.xpose.msra.mxu0 %v546
    %768 = vmatprep.subr.mxu0 0.0
    %769 = vmatpush1.xpose.msra.mxu0 0.0
    %770 = vmatprep.subr.mxu0 0.0
    %771 = vmatpush1.xpose.msra.mxu0 0.0
    %772 = vmatprep.subr.mxu0 0.0
    %773 = vmatpush1.xpose.msra.mxu0 0.0
    %774 = vmatprep.subr.mxu0 0.0
    %775 = vmatpush1.xpose.msra.mxu0 0.0
    %776 = vmatprep.subr.mxu0 0.0
    %777 = vmatpush1.xpose.msra.mxu0 0.0
    %778 = vmatprep.subr.mxu0 0.0
    %779 = vmatpush1.xpose.msra.mxu0 0.0
    %780 = vmatprep.subr.mxu0 0.0
    %781 = vmatpush1.xpose.msra.mxu0 0.0
    %782 = vmatprep.subr.mxu0 0.0
    %783 = vmatpush1.xpose.msra.mxu0 0.0
    %784 = vmatprep.subr.mxu0 0.0
    %785 = vmatpush1.xpose.msra.mxu0 0.0
    %786 = vmatprep.subr.mxu0 0.0
    %787 = vmatpush1.xpose.msra.mxu0 0.0
    %788 = vmatprep.subr.mxu0 0.0
    %789 = vmatpush1.xpose.msra.mxu0 0.0
    %790 = vmatprep.subr.mxu0 0.0
    %791 = vmatpush1.xpose.msra.mxu0 0.0
    %792 = vmatprep.subr.mxu0 0.0
    %793 = vmatpush1.xpose.msra.mxu0 0.0
    %794 = vmatprep.subr.mxu0 0.0
    %795 = vmatpush1.xpose.msra.mxu0 0.0
    %796 = vmatprep.subr.mxu0 0.0
    %797 = vmatpush1.xpose.msra.mxu0 0.0
    %798 = vmatprep.subr.mxu0 0.0
    %799 = vmatpush1.xpose.msra.mxu0 0.0
    %800 = vmatprep.subr.mxu0 0.0
    %801 = vmatpush1.xpose.msra.mxu0 0.0
    %802 = vmatprep.subr.mxu0 0.0
    %803 = vmatpush1.xpose.msra.mxu0 0.0
    %804 = vmatprep.subr.mxu0 0.0
    %805 = vmatpush1.xpose.msra.mxu0 0.0
    %806 = vmatprep.subr.mxu0 0.0
    %807 = vmatpush1.xpose.msra.mxu0 0.0
    %808 = vmatprep.subr.mxu0 0.0
    %809 = vmatpush1.xpose.msra.mxu0 0.0
    %810 = vmatprep.subr.mxu0 0.0
    %811 = vmatpush1.xpose.msra.mxu0 0.0
    %812 = vmatprep.subr.mxu0 0.0
    %813 = vmatpush1.xpose.msra.mxu0 0.0
    %814 = vmatprep.subr.mxu0 0.0
    %815 = vmatpush1.xpose.msra.mxu0 0.0
    %816 = vmatprep.subr.mxu0 0.0
    %817 = vmatpush1.xpose.msra.mxu0 0.0
    %818 = vmatprep.subr.mxu0 0.0
    %819 = vmatpush1.xpose.msra.mxu0 0.0
    %820 = vmatprep.subr.mxu0 0.0
    %821 = vmatpush1.xpose.msra.mxu0 0.0
    %822 = vmatprep.subr.mxu0 0.0
    %823 = vmatpush1.xpose.msra.mxu0 0.0
    %824 = vmatprep.subr.mxu0 0.0
    %825 = vmatpush1.xpose.msra.mxu0 0.0
    %826 = vmatprep.subr.mxu0 0.0
    %827 = vmatpush1.xpose.msra.mxu0 0.0
    %828 = vmatprep.subr.mxu0 0.0
    %829 = vmatpush1.xpose.msra.mxu0 0.0
    %830 = vmatprep.mubr.f32.mxu0 %v82
    %831 = vmatmul.mubr.f32.gmra.mrb[0].mxu0 %v81
    %v832 = vpop.f32.mrb[0].mxu0
    %v833 = vadd.f32 %v763, %v832
    %v834 = vpop.f32.mrb[0].mxu0
    %835 = vdwg.mxu0
    %v836 = vadd.f32 %v467, %v833
    %vm837 = vcmask 64512
    %838 = vst.msk [vmem:[#allocation2] sm:$0xff] %vm837, %v836
    // Predicated region
    $region34: #{tpu_custom_call.1} parent=1 // pred_check
      %p839 = pneg %p55
    $region35: #{tpu_custom_call.1} parent=1 // pred_check_branch
      %841 = sbr.rel (%p839) target = $region37
    $region36: #{tpu_custom_call.1} parent=1 // pred_region
      %v842 = vld [vmem:[#allocation2] sm:$0xff]
      %v843 = vsel %vm837, %v842, -inf
      %v844 = vrot.slane %v843, 4
      %v845 = vmax.f32 %v843, %v844
      %v846 = vrot.slane %v845, 2
      %v847 = vmax.f32 %v845, %v846
      %v848 = vrot.slane %v847, 1
      %v849 = vmax.f32 %v847, %v848
      %v850 = vsub.f32 %v842, %v849
      %v851 = vmul.f32 %v850, 1.442695
      %v852 = vpow.pop %v851
      %v853 = vsel %vm837, %v852, 0.0
      %v854 = vrot.slane %v853, 4
      %v855 = vadd.f32 %v853, %v854
      %v856 = vrot.slane %v855, 2
      %v857 = vadd.f32 %v855, %v856
      %v858 = vrot.slane %v857, 1
      %v859 = vadd.f32 %v857, %v858
      %v860 = vlog2.pop %v859
      %v861 = vmul.f32 %v860, 0.6931472
      %v862 = vadd.f32 %v849, %v861
      %vm863 = vcmask 57344
      %864 = vst.msk [vmem:[#allocation9] sm:$0x1] %vm863, %v862
    $region37: #{tpu_custom_call.1} parent=1 // pred_fallthru
      _
    // Predicated region
    $region38: #{tpu_custom_call.1} parent=1 // pred_check
      _
    $region39: #{tpu_custom_call.1} parent=1 // pred_check_branch
      %866 = sbr.rel (0) target = $region41
    $region40: #{tpu_custom_call.1} parent=1 // pred_region
      %s868 = ssub.s32 16, 16
      %869 = vsyncadd [#allocation5], %s868
      %s871 = sshll.u32 [#allocation9], 4
      %s872 = int_to_ptr.vmem [resolvable:$true] %s871
      %874 = dma.vmem_to_hbm [thread:$0]  %s872, 16, %s4, [#allocation5]
    $region41: #{tpu_custom_call.1} parent=1 // pred_fallthru
      _
    // Predicated region
    $region42: #{tpu_custom_call.1} parent=1 // pred_check
      _
    $region43: #{tpu_custom_call.1} parent=1 // pred_check_branch
      %876 = sbr.rel (0) target = $region45
    $region44: #{tpu_custom_call.1} parent=1 // pred_region
      %877 = dma.done [#allocation5], 16
    $region45: #{tpu_custom_call.1} parent=1 // pred_fallthru
      _
    %878 = vsyncpa [#allocation4], 1
    %879 = vsyncpa [#allocation7], 1
    %880 = vsyncpa [#allocation5], 1

</llo_original>
